<compile_context>
chip_gen: v7x
topology: tpu7x:2x2x1
jax: 0.10.0
libtpu: 0.0.40
codegen_flags: <defaults>
</compile_context>

<pallas_src>
import functools

import jax
import jax.numpy as jnp
from jax import lax
from jax.experimental import pallas as pl
from jax.experimental.pallas import tpu as pltpu


def _mlp_kernel(x_ref, w1_ref, b1_ref, w2_ref, b2_ref, w3_ref, b3_ref, ot_ref):
    # x tile arrives in natural (bb, D) f32 layout; cast to bf16 in-register.
    x_bf = x_ref[...].astype(jnp.bfloat16)                       # (bb, D)

    # fc1 + ReLU: contract W1's D with x's D (i.e. W1 @ x^T) -> (H1, bb).
    # Batch stays on the lane axis; no materialized transpose of x anywhere.
    h1 = lax.dot_general(
        w1_ref[...], x_bf,
        dimension_numbers=(((1,), (1,)), ((), ())),
        preferred_element_type=jnp.float32)
    h1 = jnp.maximum(h1 + b1_ref[...], 0.0)                      # b1: (H1, 1) lane-broadcast

    # fc2 + ReLU:  (H2, H1) @ (H1, bb) -> (H2, bb)
    h2 = jnp.dot(w2_ref[...], h1.astype(w2_ref.dtype),
                 preferred_element_type=jnp.float32)
    h2 = jnp.maximum(h2 + b2_ref[...], 0.0)

    # fc3:  (1, H2) @ (H2, bb) -> (1, bb)  — full-lane-width result, no N=1 waste.
    logits = jnp.dot(w3_ref[...], h2.astype(w3_ref.dtype),
                     preferred_element_type=jnp.float32) + b3_ref[...]

    # Numerically robust sigmoid: exp + approx reciprocal both run on the EUP
    # and never evaluate exp of a large positive argument.
    z = jnp.exp(-jnp.abs(logits))
    sig_pos = pl.reciprocal(1.0 + z, approx=True)                # sigmoid(|logits|)
    sig = jnp.where(logits >= 0.0, sig_pos, 1.0 - sig_pos)

    ot_ref[...] = sig.astype(ot_ref.dtype)


def _choose_batch_tile(batch, block_b):
    """Batch tile (lane axis inside the kernel)."""
    if batch <= 512:
        return batch  # single tile covering the whole batch (full-dim block is allowed)
    # Clamp to a VMEM-safe size (f32 x tile, double-buffered, stays far under the
    # 32 MiB scoped limit even on v7x's 64 MiB VMEM), round to a multiple of 256
    # (whole MXU N tiles on v6e/v7x; 128 would suffice on v5e), and guarantee at
    # least 2 grid steps so the "parallel" axis has work for both v7x TensorCores.
    tile = min(block_b, 32768)
    tile = min(tile, ((batch + 511) // 512) * 256)   # round_up(ceil(B/2), 256)
    return max(256, (tile // 256) * 256)


@functools.partial(jax.jit, static_argnames=("block_b",))
def nnbp_forward(x, w1, b1, w2, b2, w3, b3, *, block_b=8192):
    """Forward pass of NNBPClassifier.

    x : (B, D) float32
    w1: (H1, D), b1: (H1,)   -- natural PyTorch nn.Linear layout
    w2: (H2, H1), b2: (H2,)
    w3: (1,  H2), b3: (1,)
    returns (B, 1) float32 sigmoid probabilities.
    """
    B, D = x.shape
    H1 = w1.shape[0]
    H2 = w2.shape[0]

    bb = _choose_batch_tile(B, block_b)
    grid = (pl.cdiv(B, bb),)

    # Tiny resident operands: bf16 weights for the MXU, f32 bias columns.
    w1b = w1.astype(jnp.bfloat16)
    w2b = w2.astype(jnp.bfloat16)
    w3b = w3.astype(jnp.bfloat16)
    b1c = b1.reshape(H1, 1).astype(jnp.float32)
    b2c = b2.reshape(H2, 1).astype(jnp.float32)
    b3c = b3.reshape(1, 1).astype(jnp.float32)

    grid_spec = pl.GridSpec(
        grid=grid,
        in_specs=[
            pl.BlockSpec((bb, D), lambda i: (i, 0)),     # x: streamed over batch, natural layout
            pl.BlockSpec((H1, D), lambda i: (0, 0)),     # w1 (resident)
            pl.BlockSpec((H1, 1), lambda i: (0, 0)),     # b1
            pl.BlockSpec((H2, H1), lambda i: (0, 0)),    # w2
            pl.BlockSpec((H2, 1), lambda i: (0, 0)),     # b2
            pl.BlockSpec((1, H2), lambda i: (0, 0)),     # w3
            pl.BlockSpec((1, 1), lambda i: (0, 0)),      # b3
        ],
        out_specs=pl.BlockSpec((1, bb), lambda i: (0, i)),   # lane-dense output row
    )

    out_t = pl.pallas_call(
        _mlp_kernel,
        out_shape=jax.ShapeDtypeStruct((1, B), jnp.float32),
        grid_spec=grid_spec,
        compiler_params=pltpu.CompilerParams(
            dimension_semantics=("parallel",),           # megacore-shardable on v7x
            vmem_limit_bytes=32 * 1024 * 1024,           # safe on v5e/v6e/v7x; usage is tiny
        ),
    )(x, w1b, b1c, w2b, b2c, w3b, b3c)

    # (1, B) -> (B, 1): layout-free reshape (same element order), not a transpose.
    return out_t.reshape(B, 1)


def init_params(key, input_dim, hidden_dim1, hidden_dim2):
    """Deterministic init mimicking nn.Linear's U(-1/sqrt(fan_in), 1/sqrt(fan_in))."""
    ks = jax.random.split(key, 6)

    def linear(kw, kb, fan_in, fan_out):
        bound = 1.0 / jnp.sqrt(jnp.float32(fan_in))
        w = jax.random.uniform(kw, (fan_out, fan_in), jnp.float32, -bound, bound)
        b = jax.random.uniform(kb, (fan_out,), jnp.float32, -bound, bound)
        return w, b

    w1, b1 = linear(ks[0], ks[1], input_dim, hidden_dim1)
    w2, b2 = linear(ks[2], ks[3], hidden_dim1, hidden_dim2)
    w3, b3 = linear(ks[4], ks[5], hidden_dim2, 1)
    return w1, b1, w2, b2, w3, b3


def reference_forward(x, w1, b1, w2, b2, w3, b3):
    h1 = jnp.maximum(x @ w1.T + b1, 0.0)
    h2 = jnp.maximum(h1 @ w2.T + b2, 0.0)
    return jax.nn.sigmoid(h2 @ w3.T + b3)


if __name__ == "__main__":
    key = jax.random.PRNGKey(0)
    k_x, k_p = jax.random.split(key)

    # Small but non-trivial: B=1000 gives a 2-step grid (bb=512) plus a ragged
    # final tile whose padded lanes are clipped on writeback.
    batch = 1000
    input_dim = 64
    hidden_dim1 = 32
    hidden_dim2 = 16

    x = jax.random.normal(k_x, (batch, input_dim), jnp.float32)
    params = init_params(k_p, input_dim, hidden_dim1, hidden_dim2)

    out = nnbp_forward(x, *params)
    out = jax.block_until_ready(out)

    ref = reference_forward(x, *params)
    assert out.shape == (batch, 1), out.shape
    # bf16 matmul operands + approx reciprocal in the sigmoid: compare against
    # the f32 reference with a bf16-appropriate tolerance (outputs are in [0, 1]).
    assert jnp.max(jnp.abs(out - ref)) < 2e-2, "mismatch vs pure-JAX reference"

    print("KERNEL_OK")
</pallas_src>

<mosaic_0001>
module attributes {stable_mosaic.version = 11 : i64} {
  func.func @_mlp_kernel(%arg0: i32, %arg1: memref<512x64xf32, #tpu.memory_space<vmem>>, %arg2: memref<32x64xbf16, #tpu.memory_space<vmem>>, %arg3: memref<32x1xf32, #tpu.memory_space<vmem>>, %arg4: memref<16x32xbf16, #tpu.memory_space<vmem>>, %arg5: memref<16x1xf32, #tpu.memory_space<vmem>>, %arg6: memref<1x16xbf16, #tpu.memory_space<vmem>>, %arg7: memref<1x1xf32, #tpu.memory_space<vmem>>, %arg8: memref<1x512xf32, #tpu.memory_space<vmem>>) attributes {dimension_semantics = [#tpu.dimension_semantics<parallel>], iteration_bounds = array<i64: 2>, scalar_prefetch = 0 : i64, scratch_operands = 0 : i64, tpu.core_type = #tpu.core_type<tc>, window_params = [{transform_indices = @transform_0, window_bounds = array<i64: 512, 64>}, {pipeline_mode = #tpu.pipeline_mode<synchronous>, transform_indices = @transform_1, window_bounds = array<i64: 32, 64>}, {pipeline_mode = #tpu.pipeline_mode<synchronous>, transform_indices = @transform_2, window_bounds = array<i64: 32, 1>}, {pipeline_mode = #tpu.pipeline_mode<synchronous>, transform_indices = @transform_3, window_bounds = array<i64: 16, 32>}, {pipeline_mode = #tpu.pipeline_mode<synchronous>, transform_indices = @transform_4, window_bounds = array<i64: 16, 1>}, {pipeline_mode = #tpu.pipeline_mode<synchronous>, transform_indices = @transform_5, window_bounds = array<i64: 1, 16>}, {pipeline_mode = #tpu.pipeline_mode<synchronous>, transform_indices = @transform_6, window_bounds = array<i64: 1, 1>}, {transform_indices = @transform_7, window_bounds = array<i64: 1, 512>}]} {
    %c0 = arith.constant 0 : index
    %c0_0 = arith.constant 0 : index
    %0 = vector.load %arg1[%c0, %c0_0] : memref<512x64xf32, #tpu.memory_space<vmem>>, vector<512x64xf32>
    %1 = arith.truncf %0 : vector<512x64xf32> to vector<512x64xbf16>
    %c0_1 = arith.constant 0 : index
    %c0_2 = arith.constant 0 : index
    %2 = vector.load %arg2[%c0_1, %c0_2] : memref<32x64xbf16, #tpu.memory_space<vmem>>, vector<32x64xbf16>
    %cst = arith.constant dense<0.000000e+00> : vector<32x512xf32>
    %3 = tpu.matmul %2, %1, %cst {dimension_numbers = #tpu.dot_dimension_numbers<[1], [1], [0], [0], [0, 0, 1, 0], [], []>} : vector<32x64xbf16>, vector<512x64xbf16>, vector<32x512xf32> -> vector<32x512xf32>
    %c0_3 = arith.constant 0 : index
    %c0_4 = arith.constant 0 : index
    %4 = vector.load %arg3[%c0_3, %c0_4] : memref<32x1xf32, #tpu.memory_space<vmem>>, vector<32x1xf32>
    %5 = vector.broadcast %4 : vector<32x1xf32> to vector<32x512xf32>
    %6 = arith.addf %3, %5 : vector<32x512xf32>
    %cst_5 = arith.constant 0.000000e+00 : f32
    %7 = vector.broadcast %cst_5 : f32 to vector<32x512xf32>
    %8 = arith.maximumf %6, %7 : vector<32x512xf32>
    %c0_6 = arith.constant 0 : index
    %c0_7 = arith.constant 0 : index
    %9 = vector.load %arg4[%c0_6, %c0_7] : memref<16x32xbf16, #tpu.memory_space<vmem>>, vector<16x32xbf16>
    %10 = arith.truncf %8 : vector<32x512xf32> to vector<32x512xbf16>
    %cst_8 = arith.constant dense<0.000000e+00> : vector<16x512xf32>
    %11 = tpu.matmul %9, %10, %cst_8 {dimension_numbers = #tpu.dot_dimension_numbers<[1], [0], [0], [1], [0, 0, 1, 1], [], []>} : vector<16x32xbf16>, vector<32x512xbf16>, vector<16x512xf32> -> vector<16x512xf32>
    %c0_9 = arith.constant 0 : index
    %c0_10 = arith.constant 0 : index
    %12 = vector.load %arg5[%c0_9, %c0_10] : memref<16x1xf32, #tpu.memory_space<vmem>>, vector<16x1xf32>
    %13 = vector.broadcast %12 : vector<16x1xf32> to vector<16x512xf32>
    %14 = arith.addf %11, %13 : vector<16x512xf32>
    %cst_11 = arith.constant 0.000000e+00 : f32
    %15 = vector.broadcast %cst_11 : f32 to vector<16x512xf32>
    %16 = arith.maximumf %14, %15 : vector<16x512xf32>
    %c0_12 = arith.constant 0 : index
    %c0_13 = arith.constant 0 : index
    %17 = vector.load %arg6[%c0_12, %c0_13] : memref<1x16xbf16, #tpu.memory_space<vmem>>, vector<1x16xbf16>
    %18 = arith.truncf %16 : vector<16x512xf32> to vector<16x512xbf16>
    %cst_14 = arith.constant dense<0.000000e+00> : vector<1x512xf32>
    %19 = tpu.matmul %17, %18, %cst_14 {dimension_numbers = #tpu.dot_dimension_numbers<[1], [0], [0], [1], [0, 0, 1, 1], [], []>} : vector<1x16xbf16>, vector<16x512xbf16>, vector<1x512xf32> -> vector<1x512xf32>
    %c0_15 = arith.constant 0 : index
    %c0_16 = arith.constant 0 : index
    %20 = vector.load %arg7[%c0_15, %c0_16] : memref<1x1xf32, #tpu.memory_space<vmem>>, vector<1x1xf32>
    %21 = vector.broadcast %20 : vector<1x1xf32> to vector<1x512xf32>
    %22 = arith.addf %19, %21 : vector<1x512xf32>
    %23 = math.absf %22 : vector<1x512xf32>
    %cst_17 = arith.constant 0.000000e+00 : f32
    %24 = vector.broadcast %cst_17 : f32 to vector<1x512xf32>
    %25 = arith.subf %24, %23 : vector<1x512xf32>
    %26 = math.exp %25 : vector<1x512xf32>
    %cst_18 = arith.constant 1.000000e+00 : f32
    %27 = vector.broadcast %cst_18 : f32 to vector<1x512xf32>
    %28 = arith.addf %27, %26 : vector<1x512xf32>
    %29 = tpu.reciprocal %28 {approx = true} : vector<1x512xf32> -> vector<1x512xf32>
    %cst_19 = arith.constant 0.000000e+00 : f32
    %30 = vector.broadcast %cst_19 : f32 to vector<1x512xf32>
    %31 = arith.cmpf oge, %22, %30 : vector<1x512xf32>
    %cst_20 = arith.constant 1.000000e+00 : f32
    %32 = vector.broadcast %cst_20 : f32 to vector<1x512xf32>
    %33 = arith.subf %32, %29 : vector<1x512xf32>
    %34 = arith.select %31, %29, %33 : vector<1x512xi1>, vector<1x512xf32>
    %c0_21 = arith.constant 0 : index
    %c0_22 = arith.constant 0 : index
    %35 = vector.load %arg8[%c0_21, %c0_22] : memref<1x512xf32, #tpu.memory_space<vmem>>, vector<1x512xf32>
    tpu.vector_store %arg8[%c0_21, %c0_22], %34 {strides = array<i32>} : memref<1x512xf32, #tpu.memory_space<vmem>>, vector<1x512xf32>,
    return
  }
  func.func @transform_0(%arg0: i32) -> (i32, i32) {
    %c0_i32 = arith.constant 0 : i32
    %c0_i32_0 = arith.constant 0 : i32
    return %arg0, %c0_i32 : i32, i32
  }
  func.func @transform_1(%arg0: i32) -> (i32, i32) {
    %c0_i32 = arith.constant 0 : i32
    %c0_i32_0 = arith.constant 0 : i32
    %c0_i32_1 = arith.constant 0 : i32
    return %c0_i32, %c0_i32_0 : i32, i32
  }
  func.func @transform_2(%arg0: i32) -> (i32, i32) {
    %c0_i32 = arith.constant 0 : i32
    %c0_i32_0 = arith.constant 0 : i32
    %c0_i32_1 = arith.constant 0 : i32
    return %c0_i32, %c0_i32_0 : i32, i32
  }
  func.func @transform_3(%arg0: i32) -> (i32, i32) {
    %c0_i32 = arith.constant 0 : i32
    %c0_i32_0 = arith.constant 0 : i32
    %c0_i32_1 = arith.constant 0 : i32
    return %c0_i32, %c0_i32_0 : i32, i32
  }
  func.func @transform_4(%arg0: i32) -> (i32, i32) {
    %c0_i32 = arith.constant 0 : i32
    %c0_i32_0 = arith.constant 0 : i32
    %c0_i32_1 = arith.constant 0 : i32
    return %c0_i32, %c0_i32_0 : i32, i32
  }
  func.func @transform_5(%arg0: i32) -> (i32, i32) {
    %c0_i32 = arith.constant 0 : i32
    %c0_i32_0 = arith.constant 0 : i32
    %c0_i32_1 = arith.constant 0 : i32
    return %c0_i32, %c0_i32_0 : i32, i32
  }
  func.func @transform_6(%arg0: i32) -> (i32, i32) {
    %c0_i32 = arith.constant 0 : i32
    %c0_i32_0 = arith.constant 0 : i32
    %c0_i32_1 = arith.constant 0 : i32
    return %c0_i32, %c0_i32_0 : i32, i32
  }
  func.func @transform_7(%arg0: i32) -> (i32, i32) {
    %c0_i32 = arith.constant 0 : i32
    %c0_i32_0 = arith.constant 0 : i32
    return %c0_i32, %arg0 : i32, i32
  }
}

</mosaic_0001>

<llo_original>
// kernel: nnbp_forward.1
$region0: #{nnbp_forward.1}
  #allocation0 [shape = 'u32[]', space=smem, size = 0x4, offset = 0x4, fixed_abs, tag = 'smem constant byte address 0x4 - core index']
  #allocation1 [shape = 'u32[144,128]{1,0:T(1,128)}', space=vmem, size = 0x12000, scoped, tag = 'internal scratch']
  #allocation2 [shape = 'f32[1,1]{1,0:T(1,128)S(1)}', space=vmem, size = 0x200, scoped, tag = 'scoped memory for nnbp_forward.1']
  %s0 = inlined_call_operand.vmem [shape: f32[1000,64], index: 0, kind: input, shape index: {}]
  %s1 = inlined_call_operand.vmem [shape: bf16[32,64], index: 1, kind: input, shape index: {}]
  %s2 = inlined_call_operand.vmem [shape: f32[32,1], index: 2, kind: input, shape index: {}]
  %s3 = inlined_call_operand.vmem [shape: bf16[16,32], index: 3, kind: input, shape index: {}]
  %s4 = inlined_call_operand.vmem [shape: f32[16,1], index: 4, kind: input, shape index: {}]
  %s5 = inlined_call_operand.vmem [shape: bf16[1,16], index: 5, kind: input, shape index: {}]
  %s6 = inlined_call_operand.<no memory space> [shape: f32[1,1], index: 6, kind: input, shape index: {}]
  %s7 = inlined_call_operand.hbm [shape: f32[1,1000], index: 7, kind: output, shape index: {}]
  %s8 = sld [smem:[#allocation0]]
  $region61: #{nnbp_forward.1} parent=0
    _
  %s10 = ssub.s32 1, %s8
  %s11 = scalar_select 0, %s10, %s8
  %v12 = vstv %s6
  %13 = vst [vmem:[#allocation2] sm:$0x1] %v12
  $region1: #{nnbp_forward.1} parent=0
    #allocation3 [shape = 'u8[4096]{0}', space=vmem, size = 0x1000, scoped, tag = 'output window, operand 0']
    #allocation4 [shape = 's32[2]{0}', space=sflag, size = 0x8, scoped, tag = 'scoped memory for nnbp_forward.1']
    %14 = vsyncpa [#allocation4], 0
    %s15 = scalar_lea.sflag [#allocation4], 1
    %16 = vsyncpa %s15, 0
    loop: start=0, step=1, limit=4
    $region2: #{nnbp_forward.1} parent=1 // loop_pre_header
      _
    $region3: #{nnbp_forward.1} parent=1 // loop_header
      %s18 = sphi 0, %s22
      %p19 = scmp.ge.s32.totalorder %s18, 4
      %s28 = sphi 0, %s30
      %s31 = sphi 0, %s28
      %s32 = sphi 0, %s31
      %s48 = sphi 0, %s32
      %s52 = sphi 0, %s52
      %s54 = sphi 0, %s52
      %s55 = sphi 0, %s54
      %s69 = sphi 0, %s55
      %s73 = sphi 0, %s73
      %s75 = sphi 0, %s73
      %s76 = sphi 0, %s75
      %s90 = sphi 0, %s76
      %s94 = sphi 0, %s94
      %s96 = sphi 0, %s94
      %s97 = sphi 0, %s96
      %s111 = sphi 0, %s97
      %s115 = sphi 0, %s115
      %s117 = sphi 0, %s115
      %s118 = sphi 0, %s117
      %s132 = sphi 0, %s118
      %s136 = sphi 0, %s136
      %s138 = sphi 0, %s136
      %s139 = sphi 0, %s138
      %s153 = sphi 0, %s139
      %s157 = sphi 0, %s157
      %s159 = sphi 0, %s157
      %s160 = sphi 0, %s159
      %s174 = sphi 0, %s160
      %s180 = sphi 0, %s182
      %s183 = sphi 0, %s180
      %s184 = sphi 0, %s183
      %s200 = sphi 0, %s184
    $region4: #{nnbp_forward.1} parent=1 // loop_header_branch
      %21 = sbr.rel (%p19) target = $region8
    $region5: #{nnbp_forward.1} parent=1 // loop_body
      %s23 = ssub.s32 %s18, 1
      %s24 = ssub.s32 %s18, 2
      %s25 = sadd.s32 %s18, 1
      %s26 = ssub.s32 %s18, %s25
      %p27 = scmp.eq.s32.totalorder %s26, 0
      %s29 = sadd.s32 %s28, 1
      %s30 = scalar_select %p27, %s28, %s29
      %p33 = pneg %p27
      %p34 = scmp.eq.s32.totalorder %s18, 1
      %p35 = por %p33, %p34
      %p36 = scmp.ne.s32.totalorder %s28, %s31
      %p37 = scmp.eq.s32.totalorder %s18, 0
      %p38 = por %p36, %p37
      %p39 = scmp.ne.s32.totalorder %s28, %s31
      %p40 = scmp.eq.s32.totalorder %s23, 1
      %p41 = por %p39, %p40
      %p42 = scmp.ne.s32.totalorder %s31, %s32
      %p43 = scmp.eq.s32.totalorder %s23, 0
      %p44 = por %p42, %p43
      %p45 = scmp.ne.s32.totalorder %s31, %s32
      %p46 = scmp.eq.s32.totalorder %s24, 1
      %p47 = por %p45, %p46
      %p49 = scmp.ne.s32.totalorder %s32, %s48
      %p50 = scmp.eq.s32.totalorder %s24, 0
      %p51 = por %p49, %p50
      %s53 = sadd.s32 %s52, 1
      %p56 = scmp.eq.s32.totalorder %s18, 1
      %p57 = scmp.ne.s32.totalorder %s52, %s54
      %p58 = scmp.eq.s32.totalorder %s18, 0
      %p59 = por %p57, %p58
      %p60 = scmp.ne.s32.totalorder %s52, %s54
      %p61 = scmp.eq.s32.totalorder %s23, 1
      %p62 = por %p60, %p61
      %p63 = scmp.ne.s32.totalorder %s54, %s55
      %p64 = scmp.eq.s32.totalorder %s23, 0
      %p65 = por %p63, %p64
      %p66 = scmp.ne.s32.totalorder %s54, %s55
      %p67 = scmp.eq.s32.totalorder %s24, 1
      %p68 = por %p66, %p67
      %p70 = scmp.ne.s32.totalorder %s55, %s69
      %p71 = scmp.eq.s32.totalorder %s24, 0
      %p72 = por %p70, %p71
      %s74 = sadd.s32 %s73, 1
      %p77 = scmp.eq.s32.totalorder %s18, 1
      %p78 = scmp.ne.s32.totalorder %s73, %s75
      %p79 = scmp.eq.s32.totalorder %s18, 0
      %p80 = por %p78, %p79
      %p81 = scmp.ne.s32.totalorder %s73, %s75
      %p82 = scmp.eq.s32.totalorder %s23, 1
      %p83 = por %p81, %p82
      %p84 = scmp.ne.s32.totalorder %s75, %s76
      %p85 = scmp.eq.s32.totalorder %s23, 0
      %p86 = por %p84, %p85
      %p87 = scmp.ne.s32.totalorder %s75, %s76
      %p88 = scmp.eq.s32.totalorder %s24, 1
      %p89 = por %p87, %p88
      %p91 = scmp.ne.s32.totalorder %s76, %s90
      %p92 = scmp.eq.s32.totalorder %s24, 0
      %p93 = por %p91, %p92
      %s95 = sadd.s32 %s94, 1
      %p98 = scmp.eq.s32.totalorder %s18, 1
      %p99 = scmp.ne.s32.totalorder %s94, %s96
      %p100 = scmp.eq.s32.totalorder %s18, 0
      %p101 = por %p99, %p100
      %p102 = scmp.ne.s32.totalorder %s94, %s96
      %p103 = scmp.eq.s32.totalorder %s23, 1
      %p104 = por %p102, %p103
      %p105 = scmp.ne.s32.totalorder %s96, %s97
      %p106 = scmp.eq.s32.totalorder %s23, 0
      %p107 = por %p105, %p106
      %p108 = scmp.ne.s32.totalorder %s96, %s97
      %p109 = scmp.eq.s32.totalorder %s24, 1
      %p110 = por %p108, %p109
      %p112 = scmp.ne.s32.totalorder %s97, %s111
      %p113 = scmp.eq.s32.totalorder %s24, 0
      %p114 = por %p112, %p113
      %s116 = sadd.s32 %s115, 1
      %p119 = scmp.eq.s32.totalorder %s18, 1
      %p120 = scmp.ne.s32.totalorder %s115, %s117
      %p121 = scmp.eq.s32.totalorder %s18, 0
      %p122 = por %p120, %p121
      %p123 = scmp.ne.s32.totalorder %s115, %s117
      %p124 = scmp.eq.s32.totalorder %s23, 1
      %p125 = por %p123, %p124
      %p126 = scmp.ne.s32.totalorder %s117, %s118
      %p127 = scmp.eq.s32.totalorder %s23, 0
      %p128 = por %p126, %p127
      %p129 = scmp.ne.s32.totalorder %s117, %s118
      %p130 = scmp.eq.s32.totalorder %s24, 1
      %p131 = por %p129, %p130
      %p133 = scmp.ne.s32.totalorder %s118, %s132
      %p134 = scmp.eq.s32.totalorder %s24, 0
      %p135 = por %p133, %p134
      %s137 = sadd.s32 %s136, 1
      %p140 = scmp.eq.s32.totalorder %s18, 1
      %p141 = scmp.ne.s32.totalorder %s136, %s138
      %p142 = scmp.eq.s32.totalorder %s18, 0
      %p143 = por %p141, %p142
      %p144 = scmp.ne.s32.totalorder %s136, %s138
      %p145 = scmp.eq.s32.totalorder %s23, 1
      %p146 = por %p144, %p145
      %p147 = scmp.ne.s32.totalorder %s138, %s139
      %p148 = scmp.eq.s32.totalorder %s23, 0
      %p149 = por %p147, %p148
      %p150 = scmp.ne.s32.totalorder %s138, %s139
      %p151 = scmp.eq.s32.totalorder %s24, 1
      %p152 = por %p150, %p151
      %p154 = scmp.ne.s32.totalorder %s139, %s153
      %p155 = scmp.eq.s32.totalorder %s24, 0
      %p156 = por %p154, %p155
      %s158 = sadd.s32 %s157, 1
      %p161 = scmp.eq.s32.totalorder %s18, 1
      %p162 = scmp.ne.s32.totalorder %s157, %s159
      %p163 = scmp.eq.s32.totalorder %s18, 0
      %p164 = por %p162, %p163
      %p165 = scmp.ne.s32.totalorder %s157, %s159
      %p166 = scmp.eq.s32.totalorder %s23, 1
      %p167 = por %p165, %p166
      %p168 = scmp.ne.s32.totalorder %s159, %s160
      %p169 = scmp.eq.s32.totalorder %s23, 0
      %p170 = por %p168, %p169
      %p171 = scmp.ne.s32.totalorder %s159, %s160
      %p172 = scmp.eq.s32.totalorder %s24, 1
      %p173 = por %p171, %p172
      %p175 = scmp.ne.s32.totalorder %s160, %s174
      %p176 = scmp.eq.s32.totalorder %s24, 0
      %p177 = por %p175, %p176
      %s178 = ssub.s32 %s18, %s25
      %p179 = scmp.eq.s32.totalorder %s178, 0
      %s181 = sadd.s32 %s180, 1
      %s182 = scalar_select %p179, %s180, %s181
      %p185 = pneg %p179
      %p186 = scmp.eq.s32.totalorder %s18, 1
      %p187 = por %p185, %p186
      %p188 = scmp.ne.s32.totalorder %s180, %s183
      %p189 = scmp.eq.s32.totalorder %s18, 0
      %p190 = por %p188, %p189
      %p191 = scmp.ne.s32.totalorder %s180, %s183
      %p192 = scmp.eq.s32.totalorder %s23, 1
      %p193 = por %p191, %p192
      %p194 = scmp.ne.s32.totalorder %s183, %s184
      %p195 = scmp.eq.s32.totalorder %s23, 0
      %p196 = por %p194, %p195
      %p197 = scmp.ne.s32.totalorder %s183, %s184
      %p198 = scmp.eq.s32.totalorder %s24, 1
      %p199 = por %p197, %p198
      %p201 = scmp.ne.s32.totalorder %s184, %s200
      %p202 = scmp.eq.s32.totalorder %s24, 0
      %p203 = por %p201, %p202
      %p204 = scmp.le.s32.totalorder 1, %s18
      %p205 = scmp.lt.s32.totalorder %s18, 3
      %p206 = pnand %p204, %p205
      %p207 = pneg %p206
      // Predicated region
      $region9: #{nnbp_forward.1} parent=5 // pred_check
        _
      $region10: #{nnbp_forward.1} parent=5 // pred_check_branch
        %209 = sbr.rel (%p206) target = $region12
      $region11: #{nnbp_forward.1} parent=5 // pred_region
        %s210 = ssub.s32 %s18, 1
        // Predicated region
        $region13: #{nnbp_forward.1} parent=11 // pred_check
          %p211 = pneg %p65
        $region14: #{nnbp_forward.1} parent=11 // pred_check_branch
          %213 = sbr.rel (%p211) target = $region16
        $region15: #{nnbp_forward.1} parent=11 // pred_region
          _
        $region16: #{nnbp_forward.1} parent=11 // pred_fallthru
          _
        // Predicated region
        $region17: #{nnbp_forward.1} parent=11 // pred_check
          %p214 = pneg %p86
        $region18: #{nnbp_forward.1} parent=11 // pred_check_branch
          %216 = sbr.rel (%p214) target = $region20
        $region19: #{nnbp_forward.1} parent=11 // pred_region
          _
        $region20: #{nnbp_forward.1} parent=11 // pred_fallthru
          _
        // Predicated region
        $region21: #{nnbp_forward.1} parent=11 // pred_check
          %p217 = pneg %p107
        $region22: #{nnbp_forward.1} parent=11 // pred_check_branch
          %219 = sbr.rel (%p217) target = $region24
        $region23: #{nnbp_forward.1} parent=11 // pred_region
          _
        $region24: #{nnbp_forward.1} parent=11 // pred_fallthru
          _
        // Predicated region
        $region25: #{nnbp_forward.1} parent=11 // pred_check
          %p220 = pneg %p128
        $region26: #{nnbp_forward.1} parent=11 // pred_check_branch
          %222 = sbr.rel (%p220) target = $region28
        $region27: #{nnbp_forward.1} parent=11 // pred_region
          _
        $region28: #{nnbp_forward.1} parent=11 // pred_fallthru
          _
        // Predicated region
        $region29: #{nnbp_forward.1} parent=11 // pred_check
          %p223 = pneg %p149
        $region30: #{nnbp_forward.1} parent=11 // pred_check_branch
          %225 = sbr.rel (%p223) target = $region32
        $region31: #{nnbp_forward.1} parent=11 // pred_region
          _
        $region32: #{nnbp_forward.1} parent=11 // pred_fallthru
          _
        // Predicated region
        $region33: #{nnbp_forward.1} parent=11 // pred_check
          %p226 = pneg %p170
        $region34: #{nnbp_forward.1} parent=11 // pred_check_branch
          %228 = sbr.rel (%p226) target = $region36
        $region35: #{nnbp_forward.1} parent=11 // pred_region
          _
        $region36: #{nnbp_forward.1} parent=11 // pred_fallthru
          _
      $region12: #{nnbp_forward.1} parent=5 // pred_fallthru
        _
      %p229 = scmp.lt.s32.totalorder %s18, 2
      // Predicated region
      $region37: #{nnbp_forward.1} parent=5 // pred_check
        %p230 = pneg %p229
      $region38: #{nnbp_forward.1} parent=5 // pred_check_branch
        %232 = sbr.rel (%p230) target = $region40
      $region39: #{nnbp_forward.1} parent=5 // pred_region
        // Predicated region
        $region41: #{nnbp_forward.1} parent=39 // pred_check
          %p233 = pneg %p38
        $region42: #{nnbp_forward.1} parent=39 // pred_check_branch
          %235 = sbr.rel (%p233) target = $region44
        $region43: #{nnbp_forward.1} parent=39 // pred_region
          %s236 = smul.u32 64, %s18
          %s237 = ssub.s32 125, %s236
          %p238 = scmp.lt.s32.totalorder %s237, 64
          %s239 = scalar_select %p238, %s237, 64
          %s240 = smul.u32 128, %s239
          %p241 = scmp.lt.s32.totalorder %s236, 124
          %s242 = scalar_select %p241, %s236, 124
          %s243 = smul.addr %s242, 8
          %s244 = scalar_lea.vmem %s0, %s243
          %s245 = smul.u32 64, %s18
          %s246 = ssub.s32 125, %s245
          %p247 = scmp.lt.s32.totalorder %s246, 64
          %s248 = scalar_select %p247, %s246, 64
          %s249 = smul.u32 128, %s248
        $region44: #{nnbp_forward.1} parent=39 // pred_fallthru
          _
      $region40: #{nnbp_forward.1} parent=5 // pred_fallthru
        _
      %p250 = scmp.le.s32.totalorder 1, %s18
      %p251 = scmp.lt.s32.totalorder %s18, 3
      %p252 = pnand %p250, %p251
      %p253 = pneg %p252
      // Predicated region
      $region45: #{nnbp_forward.1} parent=5 // pred_check
        _
      $region46: #{nnbp_forward.1} parent=5 // pred_check_branch
        %255 = sbr.rel (%p252) target = $region48
      $region47: #{nnbp_forward.1} parent=5 // pred_region
        %s256 = ssub.s32 %s18, 1
        %s257 = smul.u32 64, %s23
        %s258 = ssub.s32 125, %s257
        %p259 = scmp.lt.s32.totalorder %s258, 64
        %s260 = scalar_select %p259, %s258, 64
        %s261 = smul.u32 128, %s260
        %p262 = scmp.lt.s32.totalorder %s257, 124
        %s263 = scalar_select %p262, %s257, 124
        %s264 = smul.addr %s263, 8
        %s265 = scalar_lea.vmem %s0, %s264
        %p266 = pneg %p44
        %p267 = pneg %p41
        %p268 = pneg %p65
        %p269 = pneg %p62
        %p270 = pneg %p86
        %p271 = pneg %p83
        %p272 = pneg %p107
        %p273 = pneg %p104
        %p274 = pneg %p128
        %p275 = pneg %p125
        %p276 = pneg %p149
        %p277 = pneg %p146
        %p278 = pneg %p170
        %p279 = pneg %p167
        %p280 = pneg %p196
        %p281 = pneg %p193
        %s282 = sand.u32 %s183, 1
        %s283 = scalar_lea.sflag [#allocation4], %s282
        %s284 = sand.u32 %s183, 1
        %s285 = smul.addr %s284, 4
        %s286 = scalar_lea.vmem [#allocation3], %s285
        %s287 = smul.u32 64, %s23
        %s288 = ssub.s32 125, %s287
        %p289 = scmp.lt.s32.totalorder %s288, 64
        %s290 = scalar_select %p289, %s288, 64
        %s291 = smul.u32 128, %s290
        %p292 = scmp.lt.s32.totalorder %s287, 124
        %s293 = scalar_select %p292, %s287, 124
        %s294 = smul.addr %s293, 8
        %s295 = scalar_lea.vmem %s0, %s294
        %s296 = smul.u32 64, %s23
        %s297 = ssub.s32 125, %s296
        %p298 = scmp.lt.s32.totalorder %s297, 64
        %s299 = scalar_select %p298, %s297, 64
        %s300 = smul.u32 128, %s299
        %s301 = smul.u32 4, %s23
        %v303 = vld [vmem:[%s295] sm:$0xff]
        %v304 = vld [vmem:[%s295 + $0x8] sm:$0xff]
        %v305 = vld [vmem:[%s295 + $0x10] sm:$0xff]
        %v306 = vld [vmem:[%s295 + $0x18] sm:$0xff]
        %v307 = vld [vmem:[%s295 + $0x20] sm:$0xff]
        %v308 = vld [vmem:[%s295 + $0x28] sm:$0xff]
        %v309 = vld [vmem:[%s295 + $0x30] sm:$0xff]
        %v310 = vld [vmem:[%s295 + $0x38] sm:$0xff]
        %v311 = vld [vmem:[%s295 + $0x40] sm:$0xff]
        %v312 = vld [vmem:[%s295 + $0x48] sm:$0xff]
        %v313 = vld [vmem:[%s295 + $0x50] sm:$0xff]
        %v314 = vld [vmem:[%s295 + $0x58] sm:$0xff]
        %v315 = vld [vmem:[%s295 + $0x60] sm:$0xff]
        %v316 = vld [vmem:[%s295 + $0x68] sm:$0xff]
        %v317 = vld [vmem:[%s295 + $0x70] sm:$0xff]
        %v318 = vld [vmem:[%s295 + $0x78] sm:$0xff]
        %v319 = vld [vmem:[%s295 + $0x80] sm:$0xff]
        %v320 = vld [vmem:[%s295 + $0x88] sm:$0xff]
        %v321 = vld [vmem:[%s295 + $0x90] sm:$0xff]
        %v322 = vld [vmem:[%s295 + $0x98] sm:$0xff]
        %v323 = vld [vmem:[%s295 + $0xa0] sm:$0xff]
        %v324 = vld [vmem:[%s295 + $0xa8] sm:$0xff]
        %v325 = vld [vmem:[%s295 + $0xb0] sm:$0xff]
        %v326 = vld [vmem:[%s295 + $0xb8] sm:$0xff]
        %v327 = vld [vmem:[%s295 + $0xc0] sm:$0xff]
        %v328 = vld [vmem:[%s295 + $0xc8] sm:$0xff]
        %v329 = vld [vmem:[%s295 + $0xd0] sm:$0xff]
        %v330 = vld [vmem:[%s295 + $0xd8] sm:$0xff]
        %v331 = vld [vmem:[%s295 + $0xe0] sm:$0xff]
        %v332 = vld [vmem:[%s295 + $0xe8] sm:$0xff]
        %v333 = vld [vmem:[%s295 + $0xf0] sm:$0xff]
        %v334 = vld [vmem:[%s295 + $0xf8] sm:$0xff]
        %v335 = vld [vmem:[%s295 + $0x100] sm:$0xff]
        %v336 = vld [vmem:[%s295 + $0x108] sm:$0xff]
        %v337 = vld [vmem:[%s295 + $0x110] sm:$0xff]
        %v338 = vld [vmem:[%s295 + $0x118] sm:$0xff]
        %v339 = vld [vmem:[%s295 + $0x120] sm:$0xff]
        %v340 = vld [vmem:[%s295 + $0x128] sm:$0xff]
        %v341 = vld [vmem:[%s295 + $0x130] sm:$0xff]
        %v342 = vld [vmem:[%s295 + $0x138] sm:$0xff]
        %v343 = vld [vmem:[%s295 + $0x140] sm:$0xff]
        %v344 = vld [vmem:[%s295 + $0x148] sm:$0xff]
        %v345 = vld [vmem:[%s295 + $0x150] sm:$0xff]
        %v346 = vld [vmem:[%s295 + $0x158] sm:$0xff]
        %v347 = vld [vmem:[%s295 + $0x160] sm:$0xff]
        %v348 = vld [vmem:[%s295 + $0x168] sm:$0xff]
        %v349 = vld [vmem:[%s295 + $0x170] sm:$0xff]
        %v350 = vld [vmem:[%s295 + $0x178] sm:$0xff]
        %v351 = vld [vmem:[%s295 + $0x180] sm:$0xff]
        %v352 = vld [vmem:[%s295 + $0x188] sm:$0xff]
        %v353 = vld [vmem:[%s295 + $0x190] sm:$0xff]
        %v354 = vld [vmem:[%s295 + $0x198] sm:$0xff]
        %v355 = vld [vmem:[%s295 + $0x1a0] sm:$0xff]
        %v356 = vld [vmem:[%s295 + $0x1a8] sm:$0xff]
        %v357 = vld [vmem:[%s295 + $0x1b0] sm:$0xff]
        %v358 = vld [vmem:[%s295 + $0x1b8] sm:$0xff]
        %v359 = vld [vmem:[%s295 + $0x1c0] sm:$0xff]
        %v360 = vld [vmem:[%s295 + $0x1c8] sm:$0xff]
        %v361 = vld [vmem:[%s295 + $0x1d0] sm:$0xff]
        %v362 = vld [vmem:[%s295 + $0x1d8] sm:$0xff]
        %v363 = vld [vmem:[%s295 + $0x1e0] sm:$0xff]
        %v364 = vld [vmem:[%s295 + $0x1e8] sm:$0xff]
        %v365 = vld [vmem:[%s295 + $0x1f0] sm:$0xff]
        %v366 = vld [vmem:[%s295 + $0x1f8] sm:$0xff]
        %v367 = vpack.c.bf16 %v304, %v303
        %v368 = vpack.c.bf16 %v306, %v305
        %v369 = vpack.c.bf16 %v308, %v307
        %v370 = vpack.c.bf16 %v310, %v309
        %v371 = vpack.c.bf16 %v312, %v311
        %v372 = vpack.c.bf16 %v314, %v313
        %v373 = vpack.c.bf16 %v316, %v315
        %v374 = vpack.c.bf16 %v318, %v317
        %v375 = vpack.c.bf16 %v320, %v319
        %v376 = vpack.c.bf16 %v322, %v321
        %v377 = vpack.c.bf16 %v324, %v323
        %v378 = vpack.c.bf16 %v326, %v325
        %v379 = vpack.c.bf16 %v328, %v327
        %v380 = vpack.c.bf16 %v330, %v329
        %v381 = vpack.c.bf16 %v332, %v331
        %v382 = vpack.c.bf16 %v334, %v333
        %v383 = vpack.c.bf16 %v336, %v335
        %v384 = vpack.c.bf16 %v338, %v337
        %v385 = vpack.c.bf16 %v340, %v339
        %v386 = vpack.c.bf16 %v342, %v341
        %v387 = vpack.c.bf16 %v344, %v343
        %v388 = vpack.c.bf16 %v346, %v345
        %v389 = vpack.c.bf16 %v348, %v347
        %v390 = vpack.c.bf16 %v350, %v349
        %v391 = vpack.c.bf16 %v352, %v351
        %v392 = vpack.c.bf16 %v354, %v353
        %v393 = vpack.c.bf16 %v356, %v355
        %v394 = vpack.c.bf16 %v358, %v357
        %v395 = vpack.c.bf16 %v360, %v359
        %v396 = vpack.c.bf16 %v362, %v361
        %v397 = vpack.c.bf16 %v364, %v363
        %v398 = vpack.c.bf16 %v366, %v365
        %v399 = vld [vmem:[%s1] sm:$0xf]
        %v400 = vld [vmem:[%s1 + $0x4] sm:$0xf]
        %v401 = vld [vmem:[%s1 + $0x8] sm:$0xf]
        %v402 = vld [vmem:[%s1 + $0xc] sm:$0xf]
        %v403 = vld [vmem:[%s2] sm:$0xff]
        %v404 = vld [vmem:[%s2 + $0x8] sm:$0xff]
        %v405 = vld [vmem:[%s2 + $0x10] sm:$0xff]
        %v406 = vld [vmem:[%s2 + $0x18] sm:$0xff]
        %408 = vset.pattern.permute.xlu0 0
        %409 = vperm.xlu0 %408, %v403
        %v410 = vpop.permute.xlu0 %409
        %413 = vset.pattern.permute.xlu0 0
        %414 = vperm.xlu0 %413, %v404
        %v415 = vpop.permute.xlu0 %414
        %418 = vset.pattern.permute.xlu0 0
        %419 = vperm.xlu0 %418, %v405
        %v420 = vpop.permute.xlu0 %419
        %423 = vset.pattern.permute.xlu0 0
        %424 = vperm.xlu0 %423, %v406
        %v425 = vpop.permute.xlu0 %424
        %v431 = vunpack.c.l.b16 %v399
        %v432 = vunpack.c.l.b16 %v400
        %v433 = vunpack.c.l.b16 %v401
        %v434 = vunpack.c.l.b16 %v402
        %v435 = vpack.c.b16 %v432, %v431
        %v436 = vpack.c.b16 %v434, %v433
        %vm437 = vcmask 523264
        %v439 = vsel %vm437, %v435, 0
        %v442 = vsel %vm437, %v436, 0
        %v445 = vsel %vm437, %v367, 0
        %v448 = vsel %vm437, %v368, 0
        %v451 = vsel %vm437, %v369, 0
        %v454 = vsel %vm437, %v370, 0
        %v457 = vsel %vm437, %v371, 0
        %v460 = vsel %vm437, %v372, 0
        %v463 = vsel %vm437, %v373, 0
        %v466 = vsel %vm437, %v374, 0
        %v469 = vsel %vm437, %v375, 0
        %v472 = vsel %vm437, %v376, 0
        %v475 = vsel %vm437, %v377, 0
        %v478 = vsel %vm437, %v378, 0
        %v481 = vsel %vm437, %v379, 0
        %v484 = vsel %vm437, %v380, 0
        %v487 = vsel %vm437, %v381, 0
        %v490 = vsel %vm437, %v382, 0
        %v493 = vsel %vm437, %v383, 0
        %v496 = vsel %vm437, %v384, 0
        %v499 = vsel %vm437, %v385, 0
        %v502 = vsel %vm437, %v386, 0
        %v505 = vsel %vm437, %v387, 0
        %v508 = vsel %vm437, %v388, 0
        %v511 = vsel %vm437, %v389, 0
        %v514 = vsel %vm437, %v390, 0
        %v517 = vsel %vm437, %v391, 0
        %v520 = vsel %vm437, %v392, 0
        %v523 = vsel %vm437, %v393, 0
        %v526 = vsel %vm437, %v394, 0
        %v529 = vsel %vm437, %v395, 0
        %v532 = vsel %vm437, %v396, 0
        %v535 = vsel %vm437, %v397, 0
        %v538 = vsel %vm437, %v398, 0
        %540 = vmatprep.subr.bf16.mxu0 0
        %541 = vmatpush1.bf16.xpose.msra.mxu0 %v445
        %542 = vmatprep.subr.bf16.mxu0 0
        %543 = vmatpush1.bf16.xpose.msra.mxu0 %v448
        %544 = vmatprep.subr.bf16.mxu0 0
        %545 = vmatpush1.bf16.xpose.msra.mxu0 %v451
        %546 = vmatprep.subr.bf16.mxu0 0
        %547 = vmatpush1.bf16.xpose.msra.mxu0 %v454
        %548 = vmatprep.subr.bf16.mxu0 0
        %549 = vmatpush1.bf16.xpose.msra.mxu0 %v457
        %550 = vmatprep.subr.bf16.mxu0 0
        %551 = vmatpush1.bf16.xpose.msra.mxu0 %v460
        %552 = vmatprep.subr.bf16.mxu0 0
        %553 = vmatpush1.bf16.xpose.msra.mxu0 %v463
        %554 = vmatprep.subr.bf16.mxu0 0
        %555 = vmatpush1.bf16.xpose.msra.mxu0 %v466
        %556 = vmatprep.subr.bf16.mxu0 0
        %557 = vmatpush1.bf16.xpose.msra.mxu0 %v469
        %558 = vmatprep.subr.bf16.mxu0 0
        %559 = vmatpush1.bf16.xpose.msra.mxu0 %v472
        %560 = vmatprep.subr.bf16.mxu0 0
        %561 = vmatpush1.bf16.xpose.msra.mxu0 %v475
        %562 = vmatprep.subr.bf16.mxu0 0
        %563 = vmatpush1.bf16.xpose.msra.mxu0 %v478
        %564 = vmatprep.subr.bf16.mxu0 0
        %565 = vmatpush1.bf16.xpose.msra.mxu0 %v481
        %566 = vmatprep.subr.bf16.mxu0 0
        %567 = vmatpush1.bf16.xpose.msra.mxu0 %v484
        %568 = vmatprep.subr.bf16.mxu0 0
        %569 = vmatpush1.bf16.xpose.msra.mxu0 %v487
        %570 = vmatprep.subr.bf16.mxu0 0
        %571 = vmatpush1.bf16.xpose.msra.mxu0 %v490
        %572 = vmatprep.mubr.bf16.mxu0 0
        %573 = vmatmul.mubr.bf16.gmra.mrb[0].mxu0 %v439
        %v574 = vpop.f32.mrb[0].mxu0
        %v575 = vadd.f32 %v410, %v574
        %v576 = vpop.f32.mrb[0].mxu0
        %v577 = vadd.f32 %v410, %v576
        %v578 = vpop.f32.mrb[0].mxu0
        %v579 = vadd.f32 %v415, %v578
        %v580 = vpop.f32.mrb[0].mxu0
        %v581 = vadd.f32 %v415, %v580
        %582 = vmatprep.mubr.bf16.mxu0 0
        %583 = vmatmul.mubr.bf16.gmra.mrb[0].mxu0 %v442
        %v584 = vpop.f32.mrb[0].mxu0
        %v585 = vadd.f32 %v420, %v584
        %v586 = vpop.f32.mrb[0].mxu0
        %v587 = vadd.f32 %v420, %v586
        %v588 = vpop.f32.mrb[0].mxu0
        %v589 = vadd.f32 %v425, %v588
        %v590 = vpop.f32.mrb[0].mxu0
        %v591 = vadd.f32 %v425, %v590
        %592 = vdwg.mxu0
        %593 = vmatprep.subr.bf16.mxu0 0
        %594 = vmatpush1.bf16.xpose.msra.mxu0 %v493
        %595 = vmatprep.subr.bf16.mxu0 0
        %596 = vmatpush1.bf16.xpose.msra.mxu0 %v496
        %597 = vmatprep.subr.bf16.mxu0 0
        %598 = vmatpush1.bf16.xpose.msra.mxu0 %v499
        %599 = vmatprep.subr.bf16.mxu0 0
        %600 = vmatpush1.bf16.xpose.msra.mxu0 %v502
        %601 = vmatprep.subr.bf16.mxu0 0
        %602 = vmatpush1.bf16.xpose.msra.mxu0 %v505
        %603 = vmatprep.subr.bf16.mxu0 0
        %604 = vmatpush1.bf16.xpose.msra.mxu0 %v508
        %605 = vmatprep.subr.bf16.mxu0 0
        %606 = vmatpush1.bf16.xpose.msra.mxu0 %v511
        %607 = vmatprep.subr.bf16.mxu0 0
        %608 = vmatpush1.bf16.xpose.msra.mxu0 %v514
        %609 = vmatprep.subr.bf16.mxu0 0
        %610 = vmatpush1.bf16.xpose.msra.mxu0 %v517
        %611 = vmatprep.subr.bf16.mxu0 0
        %612 = vmatpush1.bf16.xpose.msra.mxu0 %v520
        %613 = vmatprep.subr.bf16.mxu0 0
        %614 = vmatpush1.bf16.xpose.msra.mxu0 %v523
        %615 = vmatprep.subr.bf16.mxu0 0
        %616 = vmatpush1.bf16.xpose.msra.mxu0 %v526
        %617 = vmatprep.subr.bf16.mxu0 0
        %618 = vmatpush1.bf16.xpose.msra.mxu0 %v529
        %619 = vmatprep.subr.bf16.mxu0 0
        %620 = vmatpush1.bf16.xpose.msra.mxu0 %v532
        %621 = vmatprep.subr.bf16.mxu0 0
        %622 = vmatpush1.bf16.xpose.msra.mxu0 %v535
        %623 = vmatprep.subr.bf16.mxu0 0
        %624 = vmatpush1.bf16.xpose.msra.mxu0 %v538
        %625 = vmatprep.mubr.bf16.mxu0 0
        %626 = vmatmul.mubr.bf16.gmra.mrb[0].mxu0 %v439
        %v627 = vpop.f32.mrb[0].mxu0
        %v628 = vadd.f32 %v410, %v627
        %v629 = vpop.f32.mrb[0].mxu0
        %v630 = vadd.f32 %v410, %v629
        %v631 = vpop.f32.mrb[0].mxu0
        %v632 = vadd.f32 %v415, %v631
        %v633 = vpop.f32.mrb[0].mxu0
        %v634 = vadd.f32 %v415, %v633
        %635 = vmatprep.mubr.bf16.mxu0 0
        %636 = vmatmul.mubr.bf16.gmra.mrb[0].mxu0 %v442
        %v637 = vpop.f32.mrb[0].mxu0
        %v638 = vadd.f32 %v420, %v637
        %v639 = vpop.f32.mrb[0].mxu0
        %v640 = vadd.f32 %v420, %v639
        %v641 = vpop.f32.mrb[0].mxu0
        %v642 = vadd.f32 %v425, %v641
        %v643 = vpop.f32.mrb[0].mxu0
        %v644 = vadd.f32 %v425, %v643
        %645 = vdwg.mxu0
        %v646 = vmax.f32 %v575, 0.0
        %v647 = vmax.f32 %v577, 0.0
        %v648 = vmax.f32 %v628, 0.0
        %v649 = vmax.f32 %v630, 0.0
        %v650 = vmax.f32 %v579, 0.0
        %v651 = vmax.f32 %v581, 0.0
        %v652 = vmax.f32 %v632, 0.0
        %v653 = vmax.f32 %v634, 0.0
        %v654 = vmax.f32 %v585, 0.0
        %v655 = vmax.f32 %v587, 0.0
        %v656 = vmax.f32 %v638, 0.0
        %v657 = vmax.f32 %v640, 0.0
        %v658 = vmax.f32 %v589, 0.0
        %v659 = vmax.f32 %v591, 0.0
        %v660 = vmax.f32 %v642, 0.0
        %v661 = vmax.f32 %v644, 0.0
        %v662 = vld [vmem:[%s3] sm:$0xf]
        %v663 = vld [vmem:[%s3 + $0x4] sm:$0xf]
        %v664 = vpack.c.bf16 %v650, %v646
        %v665 = vpack.c.bf16 %v651, %v647
        %v666 = vpack.c.bf16 %v652, %v648
        %v667 = vpack.c.bf16 %v653, %v649
        %v668 = vpack.c.bf16 %v658, %v654
        %v669 = vpack.c.bf16 %v659, %v655
        %v670 = vpack.c.bf16 %v660, %v656
        %v671 = vpack.c.bf16 %v661, %v657
        %v672 = vld [vmem:[%s4] sm:$0xff]
        %v673 = vld [vmem:[%s4 + $0x8] sm:$0xff]
        %675 = vset.pattern.permute.xlu0 0
        %676 = vperm.xlu0 %675, %v672
        %v677 = vpop.permute.xlu0 %676
        %680 = vset.pattern.permute.xlu0 0
        %681 = vperm.xlu0 %680, %v673
        %v682 = vpop.permute.xlu0 %681
        %v686 = vunpack.c.l.b16 %v662
        %v687 = vunpack.c.l.b16 %v663
        %v688 = vpack.c.b16 %v687, %v686
        %vm689 = vcmask 261120
        %v691 = vsel %vm689, %v688, 0
        %693 = vmatprep.subr.bf16.mxu0 %v665
        %694 = vmatpush1.bf16.msra.mxu0 %v664
        %695 = vmatprep.subr.bf16.mxu0 %v669
        %696 = vmatpush1.bf16.msra.mxu0 %v668
        %697 = vmatprep.subr.bf16.mxu0 0
        %698 = vmatpush1.bf16.msra.mxu0 0
        %699 = vmatprep.subr.bf16.mxu0 0
        %700 = vmatpush1.bf16.msra.mxu0 0
        %701 = vmatprep.subr.bf16.mxu0 0
        %702 = vmatpush1.bf16.msra.mxu0 0
        %703 = vmatprep.subr.bf16.mxu0 0
        %704 = vmatpush1.bf16.msra.mxu0 0
        %705 = vmatprep.subr.bf16.mxu0 0
        %706 = vmatpush1.bf16.msra.mxu0 0
        %707 = vmatprep.subr.bf16.mxu0 0
        %708 = vmatpush1.bf16.msra.mxu0 0
        %709 = vmatprep.subr.bf16.mxu0 0
        %710 = vmatpush1.bf16.msra.mxu0 0
        %711 = vmatprep.subr.bf16.mxu0 0
        %712 = vmatpush1.bf16.msra.mxu0 0
        %713 = vmatprep.subr.bf16.mxu0 0
        %714 = vmatpush1.bf16.msra.mxu0 0
        %715 = vmatprep.subr.bf16.mxu0 0
        %716 = vmatpush1.bf16.msra.mxu0 0
        %717 = vmatprep.subr.bf16.mxu0 0
        %718 = vmatpush1.bf16.msra.mxu0 0
        %719 = vmatprep.subr.bf16.mxu0 0
        %720 = vmatpush1.bf16.msra.mxu0 0
        %721 = vmatprep.subr.bf16.mxu0 0
        %722 = vmatpush1.bf16.msra.mxu0 0
        %723 = vmatprep.subr.bf16.mxu0 0
        %724 = vmatpush1.bf16.msra.mxu0 0
        %725 = vmatprep.mubr.bf16.mxu0 0
        %726 = vmatmul.mubr.bf16.gmra.mrb[0].mxu0 %v691
        %v727 = vpop.f32.mrb[0].mxu0
        %v728 = vadd.f32 %v677, %v727
        %v729 = vpop.f32.mrb[0].mxu0
        %v730 = vadd.f32 %v677, %v729
        %v731 = vpop.f32.mrb[0].mxu0
        %v732 = vadd.f32 %v682, %v731
        %v733 = vpop.f32.mrb[0].mxu0
        %v734 = vadd.f32 %v682, %v733
        %735 = vdwg.mxu0
        %736 = vmatprep.subr.bf16.mxu0 %v667
        %737 = vmatpush1.bf16.msra.mxu0 %v666
        %738 = vmatprep.subr.bf16.mxu0 %v671
        %739 = vmatpush1.bf16.msra.mxu0 %v670
        %740 = vmatprep.subr.bf16.mxu0 0
        %741 = vmatpush1.bf16.msra.mxu0 0
        %742 = vmatprep.subr.bf16.mxu0 0
        %743 = vmatpush1.bf16.msra.mxu0 0
        %744 = vmatprep.subr.bf16.mxu0 0
        %745 = vmatpush1.bf16.msra.mxu0 0
        %746 = vmatprep.subr.bf16.mxu0 0
        %747 = vmatpush1.bf16.msra.mxu0 0
        %748 = vmatprep.subr.bf16.mxu0 0
        %749 = vmatpush1.bf16.msra.mxu0 0
        %750 = vmatprep.subr.bf16.mxu0 0
        %751 = vmatpush1.bf16.msra.mxu0 0
        %752 = vmatprep.subr.bf16.mxu0 0
        %753 = vmatpush1.bf16.msra.mxu0 0
        %754 = vmatprep.subr.bf16.mxu0 0
        %755 = vmatpush1.bf16.msra.mxu0 0
        %756 = vmatprep.subr.bf16.mxu0 0
        %757 = vmatpush1.bf16.msra.mxu0 0
        %758 = vmatprep.subr.bf16.mxu0 0
        %759 = vmatpush1.bf16.msra.mxu0 0
        %760 = vmatprep.subr.bf16.mxu0 0
        %761 = vmatpush1.bf16.msra.mxu0 0
        %762 = vmatprep.subr.bf16.mxu0 0
        %763 = vmatpush1.bf16.msra.mxu0 0
        %764 = vmatprep.subr.bf16.mxu0 0
        %765 = vmatpush1.bf16.msra.mxu0 0
        %766 = vmatprep.subr.bf16.mxu0 0
        %767 = vmatpush1.bf16.msra.mxu0 0
        %768 = vmatprep.mubr.bf16.mxu0 0
        %769 = vmatmul.mubr.bf16.gmra.mrb[0].mxu0 %v691
        %v770 = vpop.f32.mrb[0].mxu0
        %v771 = vadd.f32 %v677, %v770
        %v772 = vpop.f32.mrb[0].mxu0
        %v773 = vadd.f32 %v677, %v772
        %v774 = vpop.f32.mrb[0].mxu0
        %v775 = vadd.f32 %v682, %v774
        %v776 = vpop.f32.mrb[0].mxu0
        %v777 = vadd.f32 %v682, %v776
        %778 = vdwg.mxu0
        %v779 = vmax.f32 %v728, 0.0
        %v780 = vmax.f32 %v730, 0.0
        %v781 = vmax.f32 %v771, 0.0
        %v782 = vmax.f32 %v773, 0.0
        %v783 = vmax.f32 %v732, 0.0
        %v784 = vmax.f32 %v734, 0.0
        %v785 = vmax.f32 %v775, 0.0
        %v786 = vmax.f32 %v777, 0.0
        %v787 = vld [vmem:[%s5] sm:$0x1]
        %v788 = vpack.c.bf16 %v783, %v779
        %v789 = vpack.c.bf16 %v784, %v780
        %v790 = vpack.c.bf16 %v785, %v781
        %v791 = vpack.c.bf16 %v786, %v782
        %v792 = vld [vmem:[#allocation2] sm:$0x1]
        %794 = vset.pattern.permute.xlu0 0
        %795 = vperm.xlu0 %794, %v792
        %v796 = vpop.permute.xlu0 %795
        %v798 = vlaneseq
        %v799 = vshrl.u32 %v798, 7
        %v800 = vsub.s32 0, %v799
        %v801 = vrot.slane %v796, %v800
        %vm802 = vcmask 130048
        %v804 = vsel %vm802, %v787, 0
        %806 = vmatprep.subr.bf16.mxu0 %v789
        %807 = vmatpush1.bf16.msra.mxu0 %v788
        %808 = vmatprep.subr.bf16.mxu0 0
        %809 = vmatpush1.bf16.msra.mxu0 0
        %810 = vmatprep.subr.bf16.mxu0 0
        %811 = vmatpush1.bf16.msra.mxu0 0
        %812 = vmatprep.subr.bf16.mxu0 0
        %813 = vmatpush1.bf16.msra.mxu0 0
        %814 = vmatprep.subr.bf16.mxu0 0
        %815 = vmatpush1.bf16.msra.mxu0 0
        %816 = vmatprep.subr.bf16.mxu0 0
        %817 = vmatpush1.bf16.msra.mxu0 0
        %818 = vmatprep.subr.bf16.mxu0 0
        %819 = vmatpush1.bf16.msra.mxu0 0
        %820 = vmatprep.subr.bf16.mxu0 0
        %821 = vmatpush1.bf16.msra.mxu0 0
        %822 = vmatprep.subr.bf16.mxu0 0
        %823 = vmatpush1.bf16.msra.mxu0 0
        %824 = vmatprep.subr.bf16.mxu0 0
        %825 = vmatpush1.bf16.msra.mxu0 0
        %826 = vmatprep.subr.bf16.mxu0 0
        %827 = vmatpush1.bf16.msra.mxu0 0
        %828 = vmatprep.subr.bf16.mxu0 0
        %829 = vmatpush1.bf16.msra.mxu0 0
        %830 = vmatprep.subr.bf16.mxu0 0
        %831 = vmatpush1.bf16.msra.mxu0 0
        %832 = vmatprep.subr.bf16.mxu0 0
        %833 = vmatpush1.bf16.msra.mxu0 0
        %834 = vmatprep.subr.bf16.mxu0 0
        %835 = vmatpush1.bf16.msra.mxu0 0
        %836 = vmatprep.subr.bf16.mxu0 0
        %837 = vmatpush1.bf16.msra.mxu0 0
        %838 = vmatprep.mubr.bf16.mxu0 0
        %839 = vmatmul.mubr.bf16.gmra.mrb[0].mxu0 %v804
        %v840 = vpop.f32.mrb[0].mxu0
        %v841 = vadd.f32 %v801, %v840
        %v842 = vpop.f32.mrb[0].mxu0
        %v843 = vadd.f32 %v801, %v842
        %v844 = vpop.f32.mrb[0].mxu0
        %v845 = vpop.f32.mrb[0].mxu0
        %846 = vdwg.mxu0
        %847 = vmatprep.subr.bf16.mxu0 %v791
        %848 = vmatpush1.bf16.msra.mxu0 %v790
        %849 = vmatprep.subr.bf16.mxu0 0
        %850 = vmatpush1.bf16.msra.mxu0 0
        %851 = vmatprep.subr.bf16.mxu0 0
        %852 = vmatpush1.bf16.msra.mxu0 0
        %853 = vmatprep.subr.bf16.mxu0 0
        %854 = vmatpush1.bf16.msra.mxu0 0
        %855 = vmatprep.subr.bf16.mxu0 0
        %856 = vmatpush1.bf16.msra.mxu0 0
        %857 = vmatprep.subr.bf16.mxu0 0
        %858 = vmatpush1.bf16.msra.mxu0 0
        %859 = vmatprep.subr.bf16.mxu0 0
        %860 = vmatpush1.bf16.msra.mxu0 0
        %861 = vmatprep.subr.bf16.mxu0 0
        %862 = vmatpush1.bf16.msra.mxu0 0
        %863 = vmatprep.subr.bf16.mxu0 0
        %864 = vmatpush1.bf16.msra.mxu0 0
        %865 = vmatprep.subr.bf16.mxu0 0
        %866 = vmatpush1.bf16.msra.mxu0 0
        %867 = vmatprep.subr.bf16.mxu0 0
        %868 = vmatpush1.bf16.msra.mxu0 0
        %869 = vmatprep.subr.bf16.mxu0 0
        %870 = vmatpush1.bf16.msra.mxu0 0
        %871 = vmatprep.subr.bf16.mxu0 0
        %872 = vmatpush1.bf16.msra.mxu0 0
        %873 = vmatprep.subr.bf16.mxu0 0
        %874 = vmatpush1.bf16.msra.mxu0 0
        %875 = vmatprep.subr.bf16.mxu0 0
        %876 = vmatpush1.bf16.msra.mxu0 0
        %877 = vmatprep.subr.bf16.mxu0 0
        %878 = vmatpush1.bf16.msra.mxu0 0
        %879 = vmatprep.mubr.bf16.mxu0 0
        %880 = vmatmul.mubr.bf16.gmra.mrb[0].mxu0 %v804
        %v881 = vpop.f32.mrb[0].mxu0
        %v882 = vadd.f32 %v801, %v881
        %v883 = vpop.f32.mrb[0].mxu0
        %v884 = vadd.f32 %v801, %v883
        %v885 = vpop.f32.mrb[0].mxu0
        %v886 = vpop.f32.mrb[0].mxu0
        %887 = vdwg.mxu0
        %v888 = vand.u32 2147483647, %v841
        %v889 = vand.u32 2147483647, %v843
        %v890 = vand.u32 2147483647, %v882
        %v891 = vand.u32 2147483647, %v884
        %v892 = vsub.f32 0.0, %v888
        %v893 = vsub.f32 0.0, %v889
        %v894 = vsub.f32 0.0, %v890
        %v895 = vsub.f32 0.0, %v891
        %v896 = vmul.f32 %v892, 1.442695
        %v897 = vpow.pop %v896
        %v898 = vmul.f32 %v893, 1.442695
        %v899 = vpow.pop %v898
        %v900 = vmul.f32 %v894, 1.442695
        %v901 = vpow.pop %v900
        %v902 = vmul.f32 %v895, 1.442695
        %v903 = vpow.pop %v902
        %v904 = vadd.f32 %v897, 1.0
        %v905 = vadd.f32 %v899, 1.0
        %v906 = vadd.f32 %v901, 1.0
        %v907 = vadd.f32 %v903, 1.0
        %v908 = vrcp.pop %v904
        %v909 = vrcp.pop %v905
        %v910 = vrcp.pop %v906
        %v911 = vrcp.pop %v907
        %vm912 = vcmp.ge.f32.partialorder %v841, 0.0
        %vm913 = vcmp.ge.f32.partialorder %v843, 0.0
        %vm914 = vcmp.ge.f32.partialorder %v882, 0.0
        %vm915 = vcmp.ge.f32.partialorder %v884, 0.0
        %v916 = vsub.f32 1.0, %v908
        %v917 = vsub.f32 1.0, %v909
        %v918 = vsub.f32 1.0, %v910
        %v919 = vsub.f32 1.0, %v911
        %v920 = vsel %vm912, %v908, %v916
        %v921 = vsel %vm913, %v909, %v917
        %v922 = vsel %vm914, %v910, %v918
        %v923 = vsel %vm915, %v911, %v919
        %v928 = vcombine.low %v920, %v921
        %v929 = vcombine.low %v922, %v923
        %v931 = vunpack.c.l.s4 1966171168
        %v932 = vunpack.c.0.s8 %v931
        %v933 = vlaneseq
        %v934 = vshrl.u32 %v933, 7
        %v935 = vsub.s32 %v932, %v934
        %v936 = vrot.slane %v928, %v935
        %v938 = vunpack.c.l.s4 1966171168
        %v939 = vunpack.c.0.s8 %v938
        %v940 = vlaneseq
        %v941 = vshrl.u32 %v940, 7
        %v942 = vsub.s32 %v939, %v941
        %v943 = vrot.slane %v929, %v942
        %v944 = vcombine.low %v936, %v943
        %v946 = vunpack.c.l.s4 1966171168
        %v947 = vunpack.c.0.s8 %v946
        %v948 = vlaneseq
        %v949 = vshrl.u32 %v948, 7
        %v950 = vsub.s32 %v947, %v949
        %v951 = vrot.slane %v944, %v950
        %v953 = vlaneseq
        %vm954 = vcmp.ge.s32.totalorder %v953, 0
        %vm955 = vcmp.lt.s32.totalorder %v953, 512
        %vm956 = vmand %vm954, %vm955
        %957 = vst.msk [vmem:[%s286] sm:$0xf] %vm956, %v951
        %s958 = sand.u32 %s183, 1
        %s959 = scalar_lea.sflag [#allocation4], %s958
        %s960 = sand.u32 %s183, 1
        %s961 = smul.addr %s960, 4
        %s962 = scalar_lea.vmem [#allocation3], %s961
        // Predicated region
        $region49: #{nnbp_forward.1} parent=47 // pred_check
          %p963 = pneg %p193
        $region50: #{nnbp_forward.1} parent=47 // pred_check_branch
          %965 = sbr.rel (%p963) target = $region52
        $region51: #{nnbp_forward.1} parent=47 // pred_region
          %s966 = smul.u32 4, %s23
          %s968 = ssub.s32 64, 64
          %969 = vsyncadd %s959, %s968
          %s970 = smul.addr %s966, 16
          %s971 = scalar_lea.hbm %s7, %s970
          %s973 = sshll.u32 %s962, 4
          %s974 = int_to_ptr.vmem [resolvable:$true] %s973
          %976 = dma.vmem_to_hbm [thread:$0]  %s974, 64, %s971, %s959
        $region52: #{nnbp_forward.1} parent=47 // pred_fallthru
          _
      $region48: #{nnbp_forward.1} parent=5 // pred_fallthru
        _
      %p977 = scmp.le.s32.totalorder 2, %s18
      // Predicated region
      $region53: #{nnbp_forward.1} parent=5 // pred_check
        %p978 = pneg %p977
      $region54: #{nnbp_forward.1} parent=5 // pred_check_branch
        %980 = sbr.rel (%p978) target = $region56
      $region55: #{nnbp_forward.1} parent=5 // pred_region
        %s981 = ssub.s32 %s18, 2
        // Predicated region
        $region57: #{nnbp_forward.1} parent=55 // pred_check
          %p982 = pneg %p199
        $region58: #{nnbp_forward.1} parent=55 // pred_check_branch
          %984 = sbr.rel (%p982) target = $region60
        $region59: #{nnbp_forward.1} parent=55 // pred_region
          %s985 = sand.u32 %s184, 1
          %s986 = scalar_lea.sflag [#allocation4], %s985
          %s987 = sand.u32 %s184, 1
          %s988 = smul.addr %s987, 4
          %s989 = scalar_lea.vmem [#allocation3], %s988
          %990 = dma.done %s986, 64
        $region60: #{nnbp_forward.1} parent=55 // pred_fallthru
          _
      $region56: #{nnbp_forward.1} parent=5 // pred_fallthru
        _
    $region6: #{nnbp_forward.1} parent=1 // loop_footer
      %s22 = sadd.s32 1, %s18
    $region7: #{nnbp_forward.1} parent=1 // loop_footer_branch
      %17 = sbr.rel target = $region3
    $region8: #{nnbp_forward.1} parent=1 // loop_exit
      _
    %991 = vsyncpa [#allocation4], 1
    %s992 = scalar_lea.sflag [#allocation4], 1
    %993 = vsyncpa %s992, 1

</llo_original>
